<compile_context>
chip_gen: v6e
topology: v6e:2x2x1
jax: 0.10.0
libtpu: 0.0.40
codegen_flags: <defaults>
</compile_context>

<pallas_src>
import functools

import jax
import jax.numpy as jnp
from jax.experimental import pallas as pl
from jax.experimental.pallas import tpu as pltpu


# ----------------------------------------------------------------------------- kernels
def _hloss_kernel_direct(labels_ref, x_ref, part_ref, *, ignore_index, n_rows, tm):
    """Whole class axis in one block: grid = (n_row_tiles,)."""
    i = pl.program_id(0)

    x = x_ref[...].astype(jnp.float32)                    # [tm, C]
    m = jnp.max(x, axis=1, keepdims=True)                 # [tm, 1]
    sh = x - m
    e = jnp.exp(sh)                                       # EUP
    s = jnp.sum(e, axis=1, keepdims=True)                 # [tm, 1]
    es = jnp.sum(e * sh, axis=1, keepdims=True)           # [tm, 1]

    # sum_c p*logp = es/s - log(s); exact reciprocal on [tm,1] keeps 1e-5 tolerance.
    row = es * pl.reciprocal(s, approx=False) - jnp.log(s)

    valid = labels_ref[...] != ignore_index               # [tm, 1] (padded labels = ignore)
    # Ragged last row tile: rows past N hold garbage (possibly NaN/Inf) -> select, never multiply.
    row_idx = i * tm + jax.lax.broadcasted_iota(jnp.int32, (tm, 1), 0)
    valid = jnp.logical_and(valid, row_idx < n_rows)

    tile_sum = jnp.sum(jnp.where(valid, row, jnp.float32(0.0)), axis=0, keepdims=True)
    part_ref[...] = (-tile_sum).reshape(1, 1, 1)


def _hloss_kernel_streamed(labels_ref, x_ref, part_ref, m_sc, s_sc, es_sc, *,
                           ignore_index, n_rows, n_cls, tm, tc):
    """Class axis streamed in chunks: grid = (n_row_tiles, n_cls_tiles), online softmax stats."""
    i = pl.program_id(0)
    j = pl.program_id(1)

    @pl.when(j == 0)
    def _():
        # Large finite negative (not -inf) so the first rescale stays NaN-free.
        m_sc[...] = jnp.full_like(m_sc, -1e30)
        s_sc[...] = jnp.zeros_like(s_sc)
        es_sc[...] = jnp.zeros_like(es_sc)

    x = x_ref[...].astype(jnp.float32)                    # [tm, tc]

    if n_cls % tc != 0:
        # Ragged last class chunk: out-of-range lanes -> -1e30 so exp underflows to
        # exactly 0 and products stay finite (and any garbage/NaN is overwritten).
        col = j * tc + jax.lax.broadcasted_iota(jnp.int32, x.shape, 1)
        x = jnp.where(col < n_cls, x, jnp.float32(-1e30))

    m_old = m_sc[...]                                     # [tm, 1]
    m_new = jnp.maximum(m_old, jnp.max(x, axis=1, keepdims=True))
    sh = x - m_new
    e = jnp.exp(sh)
    alpha = jnp.exp(m_old - m_new)                        # rescale factor for running sums
    s_new = alpha * s_sc[...] + jnp.sum(e, axis=1, keepdims=True)
    es_new = (alpha * (es_sc[...] + (m_old - m_new) * s_sc[...])
              + jnp.sum(e * sh, axis=1, keepdims=True))

    m_sc[...] = m_new
    s_sc[...] = s_new
    es_sc[...] = es_new

    @pl.when(j == pl.num_programs(1) - 1)
    def _():
        row = es_new * pl.reciprocal(s_new, approx=False) - jnp.log(s_new)   # [tm, 1]
        valid = labels_ref[...] != ignore_index
        row_idx = i * tm + jax.lax.broadcasted_iota(jnp.int32, (tm, 1), 0)
        valid = jnp.logical_and(valid, row_idx < n_rows)
        tile_sum = jnp.sum(jnp.where(valid, row, jnp.float32(0.0)), axis=0, keepdims=True)
        part_ref[...] = (-tile_sum).reshape(1, 1, 1)


# ----------------------------------------------------------------------------- planning
def _round_up(v, m):
    return ((v + m - 1) // m) * m


def _vmem_plan():
    """Scoped VMEM limit to request + share of it budgeted for pipeline buffers/temps."""
    try:
        cap = int(pltpu.get_tpu_info().vmem_capacity_bytes)
    except Exception:
        cap = 64 * 1024 * 1024            # conservative (v7x per-core)
    vmem_limit = min(cap // 2, 64 * 1024 * 1024)
    tile_budget = vmem_limit // 2          # headroom for compiler scratch / outputs
    return tile_budget, vmem_limit


def _choose_tiles(n, c, itemsize, tile_budget_bytes):
    # Sublane multiple of the storage dtype: 8 (f32), 16 (bf16), 32 (int8/fp8).
    sublane = max(8, 32 // itemsize)
    # Per-element VMEM cost of a (tm, tc) step:
    #   2x double-buffered input tile + ~4 live f32 [tm, tc] temporaries (upcast, sh, e, e*sh).
    per_elem = 2 * itemsize + 4 * 4
    # Per-row extra: lane-padded (tm, 1) labels block, double-buffered.
    row_extra = 2 * 128 * 4

    rows_full = tile_budget_bytes // (per_elem * c + row_extra)
    if rows_full >= sublane:
        tc = c                                                  # no class streaming
        tm = (rows_full // sublane) * sublane
    else:
        # Vocab-scale C: stream classes in 128-lane chunks, few rows at a time.
        tm = sublane
        tc = max(128, ((tile_budget_bytes // (per_elem * tm)) // 128) * 128)
        if tc >= c:
            tc = c

    tm = min(tm, _round_up(n, sublane))        # don't allocate rows past the input
    if n > sublane:                            # >= 2 row tiles: both v7x cores get work
        tm = min(tm, _round_up(-(-n // 2), sublane))
    tm = max(tm, sublane)
    return tm, tc


# ----------------------------------------------------------------------------- wrapper
def hloss(x, labels, ignore_index=-1, tile_override=None):
    """x: [N, C] float logits (f32 or bf16 storage; bf16 halves HBM traffic),
    labels: [N] int -> scalar float32 equal to  -sum_i 1[label_i != ignore] * sum_c p*logp.
    """
    x = jnp.asarray(x)
    labels = jnp.asarray(labels)
    n, c = x.shape
    itemsize = jnp.dtype(x.dtype).itemsize

    tile_budget, vmem_limit = _vmem_plan()
    if tile_override is not None:
        tm, tc = tile_override
    else:
        tm, tc = _choose_tiles(n, c, itemsize, tile_budget)

    n_tiles = -(-n // tm)
    c_tiles = -(-c // tc)
    n_pad = n_tiles * tm

    # Only the tiny labels vector is padded (padded rows carry ignore_index).
    labels_i32 = labels.astype(jnp.int32)
    if n_pad != n:
        labels_i32 = jnp.pad(labels_i32, (0, n_pad - n), constant_values=ignore_index)
    labels2d = labels_i32.reshape(n_pad, 1)

    cost = pl.CostEstimate(
        flops=int(6 * n * c),
        transcendentals=int(n * c),
        bytes_accessed=int(n * c * itemsize + n_pad * 4 + n_tiles * 4),
    )

    if c_tiles == 1:
        kernel = functools.partial(_hloss_kernel_direct,
                                   ignore_index=ignore_index, n_rows=n, tm=tm)
        grid = (n_tiles,)
        in_specs = [pl.BlockSpec((tm, 1), lambda i: (i, 0)),     # labels
                    pl.BlockSpec((tm, c), lambda i: (i, 0))]     # logits
        out_specs = pl.BlockSpec((1, 1, 1), lambda i: (i, 0, 0))
        scratch = []
        dims = ("parallel",)
    else:
        kernel = functools.partial(_hloss_kernel_streamed,
                                   ignore_index=ignore_index, n_rows=n, n_cls=c,
                                   tm=tm, tc=tc)
        grid = (n_tiles, c_tiles)
        in_specs = [pl.BlockSpec((tm, 1), lambda i, j: (i, 0)),  # labels
                    pl.BlockSpec((tm, tc), lambda i, j: (i, j))] # logits (class chunks)
        out_specs = pl.BlockSpec((1, 1, 1), lambda i, j: (i, 0, 0))
        scratch = [pltpu.VMEM((tm, 1), jnp.float32),             # running max
                   pltpu.VMEM((tm, 1), jnp.float32),             # running sum exp
                   pltpu.VMEM((tm, 1), jnp.float32)]             # running sum exp*shift
        dims = ("parallel", "arbitrary")

    # Output is 3-D so its last two block dims equal the full array dims
    # (keeps the (8,128) block rule trivially satisfied); per-tile partials are
    # reduced in the wrapper, keeping the row axis fully parallel (megacore-friendly).
    partials = pl.pallas_call(
        kernel,
        out_shape=jax.ShapeDtypeStruct((n_tiles, 1, 1), jnp.float32),
        grid_spec=pltpu.PrefetchScalarGridSpec(
            num_scalar_prefetch=0,
            grid=grid,
            in_specs=in_specs,
            out_specs=out_specs,
            scratch_shapes=scratch,
        ),
        compiler_params=pltpu.CompilerParams(
            dimension_semantics=dims,
            vmem_limit_bytes=int(vmem_limit),
        ),
        cost_estimate=cost,
    )(labels2d, x)

    return jnp.sum(partials)


def hloss_reference(x, labels, ignore_index=-1):
    mask = (labels != ignore_index).astype(jnp.float32)
    xf = x.astype(jnp.float32)
    logp = jax.nn.log_softmax(xf, axis=1)
    p = jax.nn.softmax(xf, axis=1)
    b = (p * logp).sum(axis=1)
    return -1.0 * jnp.dot(mask, b)


if __name__ == "__main__":
    key = jax.random.PRNGKey(0)
    k1, k2, k3, k4 = jax.random.split(key, 4)

    # Case 1: auto tiling; N=20 not a multiple of the row tile -> ragged last row tile.
    N, C = 20, 128
    x = jax.random.normal(k1, (N, C), dtype=jnp.float32)
    labels = jax.random.randint(k2, (N,), minval=-1, maxval=C, dtype=jnp.int32)
    out = jax.block_until_ready(hloss(x, labels, ignore_index=-1))
    ref = hloss_reference(x, labels, ignore_index=-1)
    assert jnp.allclose(out, ref, rtol=1e-5, atol=1e-5), (out, ref)

    # Case 2: force the class-streaming path at small shapes
    # (ragged last class chunk AND ragged last row tile).
    N2, C2 = 13, 300
    x2 = jax.random.normal(k3, (N2, C2), dtype=jnp.float32)
    labels2 = jax.random.randint(k4, (N2,), minval=-1, maxval=C2, dtype=jnp.int32)
    out2 = jax.block_until_ready(hloss(x2, labels2, ignore_index=-1, tile_override=(8, 128)))
    ref2 = hloss_reference(x2, labels2, ignore_index=-1)
    assert jnp.allclose(out2, ref2, rtol=1e-5, atol=1e-5), (out2, ref2)

    print("KERNEL_OK")
</pallas_src>

<mosaic_0001>
module attributes {stable_mosaic.version = 11 : i64} {
  func.func @_hloss_kernel_direct(%arg0: i32, %arg1: memref<16x1xi32, #tpu.memory_space<vmem>>, %arg2: memref<16x128xf32, #tpu.memory_space<vmem>>, %arg3: memref<1x1x1xf32, #tpu.memory_space<vmem>>) attributes {dimension_semantics = [#tpu.dimension_semantics<parallel>], iteration_bounds = array<i64: 2>, scalar_prefetch = 0 : i64, scratch_operands = 0 : i64, tpu.core_type = #tpu.core_type<tc>, window_params = [{transform_indices = @transform_0, window_bounds = array<i64: 16, 1>}, {transform_indices = @transform_1, window_bounds = array<i64: 16, 128>}, {transform_indices = @transform_2, window_bounds = array<i64: 1, 1, 1>}]} {
    %c0 = arith.constant 0 : index
    %c0_0 = arith.constant 0 : index
    %0 = vector.load %arg2[%c0, %c0_0] : memref<16x128xf32, #tpu.memory_space<vmem>>, vector<16x128xf32>
    %cst = arith.constant dense<0xFF800000> : vector<16xf32>
    %1 = vector.multi_reduction <maximumf>, %0, %cst [1] : vector<16x128xf32> to vector<16xf32>
    %2 = vector.shape_cast %1 : vector<16xf32> to vector<16x1xf32>
    %3 = vector.broadcast %2 : vector<16x1xf32> to vector<16x128xf32>
    %4 = arith.subf %0, %3 : vector<16x128xf32>
    %5 = math.exp %4 : vector<16x128xf32>
    %cst_1 = arith.constant dense<0.000000e+00> : vector<16xf32>
    %6 = vector.multi_reduction <add>, %5, %cst_1 [1] : vector<16x128xf32> to vector<16xf32>
    %7 = vector.shape_cast %6 : vector<16xf32> to vector<16x1xf32>
    %8 = arith.mulf %5, %4 : vector<16x128xf32>
    %cst_2 = arith.constant dense<0.000000e+00> : vector<16xf32>
    %9 = vector.multi_reduction <add>, %8, %cst_2 [1] : vector<16x128xf32> to vector<16xf32>
    %10 = vector.shape_cast %9 : vector<16xf32> to vector<16x1xf32>
    %11 = tpu.reciprocal %7 : vector<16x1xf32> -> vector<16x1xf32>
    %12 = arith.mulf %10, %11 : vector<16x1xf32>
    %13 = math.log %7 : vector<16x1xf32>
    %14 = arith.subf %12, %13 : vector<16x1xf32>
    %c0_3 = arith.constant 0 : index
    %c0_4 = arith.constant 0 : index
    %15 = vector.load %arg1[%c0_3, %c0_4] : memref<16x1xi32, #tpu.memory_space<vmem>>, vector<16x1xi32>
    %c-1_i32 = arith.constant -1 : i32
    %16 = vector.broadcast %c-1_i32 : i32 to vector<16x1xi32>
    %17 = arith.cmpi ne, %15, %16 : vector<16x1xi32>
    %c16_i32 = arith.constant 16 : i32
    %18 = arith.muli %arg0, %c16_i32 : i32
    %19 = tpu.iota {dimensions = array<i32: 0>} : vector<16x1xi32>
    %20 = vector.broadcast %18 : i32 to vector<16x1xi32>
    %21 = arith.addi %20, %19 : vector<16x1xi32>
    %c20_i32 = arith.constant 20 : i32
    %22 = vector.broadcast %c20_i32 : i32 to vector<16x1xi32>
    %23 = arith.cmpi slt, %21, %22 : vector<16x1xi32>
    %24 = arith.andi %17, %23 : vector<16x1xi1>
    %cst_5 = arith.constant 0.000000e+00 : f32
    %25 = vector.broadcast %cst_5 : f32 to vector<16x1xf32>
    %26 = arith.select %24, %14, %25 : vector<16x1xi1>, vector<16x1xf32>
    %cst_6 = arith.constant dense<0.000000e+00> : vector<1xf32>
    %27 = vector.multi_reduction <add>, %26, %cst_6 [0] : vector<16x1xf32> to vector<1xf32>
    %28 = vector.shape_cast %27 : vector<1xf32> to vector<1x1xf32>
    %cst_7 = arith.constant 0.000000e+00 : f32
    %29 = vector.broadcast %cst_7 : f32 to vector<1x1xf32>
    %30 = arith.subf %29, %28 : vector<1x1xf32>
    %31 = vector.shape_cast %30 : vector<1x1xf32> to vector<1x1x1xf32>
    %c0_8 = arith.constant 0 : index
    %c0_9 = arith.constant 0 : index
    %c0_10 = arith.constant 0 : index
    %32 = vector.load %arg3[%c0_8, %c0_9, %c0_10] : memref<1x1x1xf32, #tpu.memory_space<vmem>>, vector<1x1x1xf32>
    tpu.vector_store %arg3[%c0_8, %c0_9, %c0_10], %31 {strides = array<i32>} : memref<1x1x1xf32, #tpu.memory_space<vmem>>, vector<1x1x1xf32>,
    return
  }
  func.func @transform_0(%arg0: i32) -> (i32, i32) {
    %c0_i32 = arith.constant 0 : i32
    %c0_i32_0 = arith.constant 0 : i32
    return %arg0, %c0_i32 : i32, i32
  }
  func.func @transform_1(%arg0: i32) -> (i32, i32) {
    %c0_i32 = arith.constant 0 : i32
    %c0_i32_0 = arith.constant 0 : i32
    return %arg0, %c0_i32 : i32, i32
  }
  func.func @transform_2(%arg0: i32) -> (i32, i32, i32) {
    %c0_i32 = arith.constant 0 : i32
    %c0_i32_0 = arith.constant 0 : i32
    %c0_i32_1 = arith.constant 0 : i32
    return %arg0, %c0_i32, %c0_i32_0 : i32, i32, i32
  }
}

</mosaic_0001>

<llo_original>
// kernel: tpu_custom_call.1
$region0: #{tpu_custom_call.1}
  #allocation0 [shape = 'u32[]', space=smem, size = 0x4, offset = 0x4, fixed_abs, tag = 'smem constant byte address 0x4 - core index']
  #allocation1 [shape = 'u32[144,128]{1,0:T(1,128)}', space=vmem, size = 0x12000, scoped, tag = 'internal scratch']
  %s0 = inlined_call_operand.vmem [shape: s32[32,1], index: 0, kind: input, shape index: {}]
  %s1 = inlined_call_operand.vmem [shape: f32[20,128], index: 1, kind: input, shape index: {}]
  %s2 = inlined_call_operand.vmem [shape: f32[2,1,1], index: 2, kind: output, shape index: {}]
  %s3 = sld [smem:[#allocation0]]
  $region41: #{tpu_custom_call.1} parent=0
    _
  %s5 = ssub.s32 1, %s3
  %s6 = scalar_select 0, %s5, %s3
  loop: start=0, step=1, limit=4
  $region2: #{tpu_custom_call.1} parent=0 // loop_pre_header
    _
  $region3: #{tpu_custom_call.1} parent=0 // loop_header
    %s8 = sphi 0, %s12
    %p9 = scmp.ge.s32.totalorder %s8, 4
    %s18 = sphi 0, %s20
    %s21 = sphi 0, %s18
    %s22 = sphi 0, %s21
    %s38 = sphi 0, %s22
    %s44 = sphi 0, %s46
    %s47 = sphi 0, %s44
    %s48 = sphi 0, %s47
    %s64 = sphi 0, %s48
    %s70 = sphi 0, %s72
    %s73 = sphi 0, %s70
    %s74 = sphi 0, %s73
    %s90 = sphi 0, %s74
  $region4: #{tpu_custom_call.1} parent=0 // loop_header_branch
    %11 = sbr.rel (%p9) target = $region8
  $region5: #{tpu_custom_call.1} parent=0 // loop_body
    %s13 = ssub.s32 %s8, 1
    %s14 = ssub.s32 %s8, 2
    %s15 = sadd.s32 %s8, 1
    %s16 = ssub.s32 %s8, %s15
    %p17 = scmp.eq.s32.totalorder %s16, 0
    %s19 = sadd.s32 %s18, 1
    %s20 = scalar_select %p17, %s18, %s19
    %p23 = pneg %p17
    %p24 = scmp.eq.s32.totalorder %s8, 1
    %p25 = por %p23, %p24
    %p26 = scmp.ne.s32.totalorder %s18, %s21
    %p27 = scmp.eq.s32.totalorder %s8, 0
    %p28 = por %p26, %p27
    %p29 = scmp.ne.s32.totalorder %s18, %s21
    %p30 = scmp.eq.s32.totalorder %s13, 1
    %p31 = por %p29, %p30
    %p32 = scmp.ne.s32.totalorder %s21, %s22
    %p33 = scmp.eq.s32.totalorder %s13, 0
    %p34 = por %p32, %p33
    %p35 = scmp.ne.s32.totalorder %s21, %s22
    %p36 = scmp.eq.s32.totalorder %s14, 1
    %p37 = por %p35, %p36
    %p39 = scmp.ne.s32.totalorder %s22, %s38
    %p40 = scmp.eq.s32.totalorder %s14, 0
    %p41 = por %p39, %p40
    %s42 = ssub.s32 %s8, %s15
    %p43 = scmp.eq.s32.totalorder %s42, 0
    %s45 = sadd.s32 %s44, 1
    %s46 = scalar_select %p43, %s44, %s45
    %p49 = pneg %p43
    %p50 = scmp.eq.s32.totalorder %s8, 1
    %p51 = por %p49, %p50
    %p52 = scmp.ne.s32.totalorder %s44, %s47
    %p53 = scmp.eq.s32.totalorder %s8, 0
    %p54 = por %p52, %p53
    %p55 = scmp.ne.s32.totalorder %s44, %s47
    %p56 = scmp.eq.s32.totalorder %s13, 1
    %p57 = por %p55, %p56
    %p58 = scmp.ne.s32.totalorder %s47, %s48
    %p59 = scmp.eq.s32.totalorder %s13, 0
    %p60 = por %p58, %p59
    %p61 = scmp.ne.s32.totalorder %s47, %s48
    %p62 = scmp.eq.s32.totalorder %s14, 1
    %p63 = por %p61, %p62
    %p65 = scmp.ne.s32.totalorder %s48, %s64
    %p66 = scmp.eq.s32.totalorder %s14, 0
    %p67 = por %p65, %p66
    %s68 = ssub.s32 %s8, %s15
    %p69 = scmp.eq.s32.totalorder %s68, 0
    %s71 = sadd.s32 %s70, 1
    %s72 = scalar_select %p69, %s70, %s71
    %p75 = pneg %p69
    %p76 = scmp.eq.s32.totalorder %s8, 1
    %p77 = por %p75, %p76
    %p78 = scmp.ne.s32.totalorder %s70, %s73
    %p79 = scmp.eq.s32.totalorder %s8, 0
    %p80 = por %p78, %p79
    %p81 = scmp.ne.s32.totalorder %s70, %s73
    %p82 = scmp.eq.s32.totalorder %s13, 1
    %p83 = por %p81, %p82
    %p84 = scmp.ne.s32.totalorder %s73, %s74
    %p85 = scmp.eq.s32.totalorder %s13, 0
    %p86 = por %p84, %p85
    %p87 = scmp.ne.s32.totalorder %s73, %s74
    %p88 = scmp.eq.s32.totalorder %s14, 1
    %p89 = por %p87, %p88
    %p91 = scmp.ne.s32.totalorder %s74, %s90
    %p92 = scmp.eq.s32.totalorder %s14, 0
    %p93 = por %p91, %p92
    %p94 = scmp.le.s32.totalorder 1, %s8
    %p95 = scmp.lt.s32.totalorder %s8, 3
    %p96 = pnand %p94, %p95
    %p97 = pneg %p96
    // Predicated region
    $region9: #{tpu_custom_call.1} parent=5 // pred_check
      _
    $region10: #{tpu_custom_call.1} parent=5 // pred_check_branch
      %99 = sbr.rel (%p96) target = $region12
    $region11: #{tpu_custom_call.1} parent=5 // pred_region
      %s100 = ssub.s32 %s8, 1
    $region12: #{tpu_custom_call.1} parent=5 // pred_fallthru
      _
    %p101 = scmp.lt.s32.totalorder %s8, 2
    // Predicated region
    $region13: #{tpu_custom_call.1} parent=5 // pred_check
      %p102 = pneg %p101
    $region14: #{tpu_custom_call.1} parent=5 // pred_check_branch
      %104 = sbr.rel (%p102) target = $region16
    $region15: #{tpu_custom_call.1} parent=5 // pred_region
      // Predicated region
      $region17: #{tpu_custom_call.1} parent=15 // pred_check
        %p105 = pneg %p28
      $region18: #{tpu_custom_call.1} parent=15 // pred_check_branch
        %107 = sbr.rel (%p105) target = $region20
      $region19: #{tpu_custom_call.1} parent=15 // pred_region
        %s108 = smul.u32 2, %s8
        %p109 = scmp.lt.s32.totalorder %s108, 3
        %s110 = scalar_select %p109, %s108, 3
        %s111 = smul.addr %s110, 8
        %s112 = scalar_lea.vmem %s0, %s111
        %s113 = smul.u32 2, %s8
      $region20: #{tpu_custom_call.1} parent=15 // pred_fallthru
        _
      // Predicated region
      $region21: #{tpu_custom_call.1} parent=15 // pred_check
        %p114 = pneg %p54
      $region22: #{tpu_custom_call.1} parent=15 // pred_check_branch
        %116 = sbr.rel (%p114) target = $region24
      $region23: #{tpu_custom_call.1} parent=15 // pred_region
        %s117 = smul.u32 2, %s8
        %s118 = ssub.s32 3, %s117
        %p119 = scmp.lt.s32.totalorder %s118, 2
        %s120 = scalar_select %p119, %s118, 2
        %s121 = smul.u32 128, %s120
        %p122 = scmp.lt.s32.totalorder %s117, 2
        %s123 = scalar_select %p122, %s117, 2
        %s124 = smul.addr %s123, 8
        %s125 = scalar_lea.vmem %s1, %s124
        %s126 = smul.u32 2, %s8
        %s127 = ssub.s32 3, %s126
        %p128 = scmp.lt.s32.totalorder %s127, 2
        %s129 = scalar_select %p128, %s127, 2
        %s130 = smul.u32 128, %s129
      $region24: #{tpu_custom_call.1} parent=15 // pred_fallthru
        _
    $region16: #{tpu_custom_call.1} parent=5 // pred_fallthru
      _
    %p131 = scmp.le.s32.totalorder 1, %s8
    %p132 = scmp.lt.s32.totalorder %s8, 3
    %p133 = pnand %p131, %p132
    %p134 = pneg %p133
    // Predicated region
    $region25: #{tpu_custom_call.1} parent=5 // pred_check
      _
    $region26: #{tpu_custom_call.1} parent=5 // pred_check_branch
      %136 = sbr.rel (%p133) target = $region28
    $region27: #{tpu_custom_call.1} parent=5 // pred_region
      %s137 = ssub.s32 %s8, 1
      %s138 = smul.u32 2, %s13
      %p139 = scmp.lt.s32.totalorder %s138, 3
      %s140 = scalar_select %p139, %s138, 3
      %s141 = smul.addr %s140, 8
      %s142 = scalar_lea.vmem %s0, %s141
      %p143 = pneg %p34
      %p144 = pneg %p31
      %s145 = smul.u32 2, %s13
      %s146 = ssub.s32 3, %s145
      %p147 = scmp.lt.s32.totalorder %s146, 2
      %s148 = scalar_select %p147, %s146, 2
      %s149 = smul.u32 128, %s148
      %p150 = scmp.lt.s32.totalorder %s145, 2
      %s151 = scalar_select %p150, %s145, 2
      %s152 = smul.addr %s151, 8
      %s153 = scalar_lea.vmem %s1, %s152
      %p154 = pneg %p60
      %p155 = pneg %p57
      %p156 = pneg %p86
      %p157 = pneg %p83
      %p158 = scmp.lt.s32.totalorder %s13, 1
      %s159 = scalar_select %p158, %s13, 1
      %s160 = scalar_lea.vmem %s2, %s159
      %s161 = smul.u32 2, %s13
      %p162 = scmp.lt.s32.totalorder %s161, 3
      %s163 = scalar_select %p162, %s161, 3
      %s164 = smul.addr %s163, 8
      %s165 = scalar_lea.vmem %s0, %s164
      %s166 = smul.u32 2, %s13
      %s167 = smul.u32 2, %s13
      %s168 = ssub.s32 3, %s167
      %p169 = scmp.lt.s32.totalorder %s168, 2
      %s170 = scalar_select %p169, %s168, 2
      %s171 = smul.u32 128, %s170
      %p172 = scmp.lt.s32.totalorder %s167, 2
      %s173 = scalar_select %p172, %s167, 2
      %s174 = smul.addr %s173, 8
      %s175 = scalar_lea.vmem %s1, %s174
      %s176 = smul.u32 2, %s13
      %s177 = ssub.s32 3, %s176
      %p178 = scmp.lt.s32.totalorder %s177, 2
      %s179 = scalar_select %p178, %s177, 2
      %s180 = smul.u32 128, %s179
      %p181 = scmp.lt.s32.totalorder %s13, 1
      %s182 = scalar_select %p181, %s13, 1
      %s183 = scalar_lea.vmem %s2, %s182
      %v184 = vld [vmem:[%s175] sm:$0xff]
      %v185 = vld [vmem:[%s175 + $0x8] sm:$0xff]
      %186 = vmax.xlane.f32.xlu0 %v184
      %v187 = vpop.xlane.xlu0 %186
      %188 = vmax.xlane.f32.xlu0 %v185
      %v189 = vpop.xlane.xlu0 %188
      %v190 = vsub.f32 %v184, %v187
      %v191 = vsub.f32 %v185, %v189
      %v192 = vmul.f32 %v190, 1.442695
      %v193 = vpow.pop %v192
      %v194 = vmul.f32 %v191, 1.442695
      %v195 = vpow.pop %v194
      %196 = vadd.xlane.f32.xlu0 %v193
      %v197 = vpop.xlane.xlu0 %196
      %198 = vadd.xlane.f32.xlu0 %v195
      %v199 = vpop.xlane.xlu0 %198
      %v200 = vmul.f32 %v193, %v190
      %v201 = vmul.f32 %v195, %v191
      %202 = vadd.xlane.f32.xlu0 %v200
      %v203 = vpop.xlane.xlu0 %202
      %204 = vadd.xlane.f32.xlu0 %v201
      %v205 = vpop.xlane.xlu0 %204
      %v206 = vrcp.pop %v197
      %v207 = vrcp.pop %v199
      %v208 = vmul.f32 %v203, %v206
      %v209 = vmul.f32 %v205, %v207
      %v210 = vlog2.pop %v197
      %v211 = vmul.f32 %v210, 0.6931472
      %v212 = vlog2.pop %v199
      %v213 = vmul.f32 %v212, 0.6931472
      %v214 = vsub.f32 %v208, %v211
      %v215 = vsub.f32 %v209, %v213
      %v216 = vld [vmem:[%s165] sm:$0xff]
      %v217 = vld [vmem:[%s165 + $0x8] sm:$0xff]
      %vm218 = vcmp.ne.s32.totalorder %v216, 4294967295
      %vm219 = vcmp.ne.s32.totalorder %v217, 4294967295
      %s220 = smul.u32 %s13, 16
      %v221 = vlaneseq
      %v222 = vshrl.u32 %v221, 7
      %v223 = vadd.s32 %v222, 8
      %v224 = vstv %s220
      %v225 = vadd.s32 %v224, %v222
      %v226 = vadd.s32 %v224, %v223
      %vm227 = vcmp.lt.s32.totalorder %v225, 20
      %vm228 = vcmp.lt.s32.totalorder %v226, 20
      %vm229 = vmand %vm218, %vm227
      %vm230 = vmand %vm219, %vm228
      %v231 = vsel %vm229, %v214, 0.0
      %v232 = vsel %vm230, %v215, 0.0
      %vm233 = vcmask 7168
      %v234 = vsel %vm233, %v231, 0.0
      %v235 = vsel %vm233, %v232, 0.0
      %v236 = vadd.f32 %v234, %v235
      %v237 = vrot.slane %v236, 4
      %v238 = vadd.f32 %v236, %v237
      %v239 = vrot.slane %v238, 2
      %v240 = vadd.f32 %v238, %v239
      %v241 = vrot.slane %v240, 1
      %v242 = vadd.f32 %v240, %v241
      %v243 = vsub.f32 0.0, %v242
      %vm244 = vcmask 0
      %245 = vst.msk [vmem:[%s183] sm:$0x1] %vm244, %v243
      %p246 = scmp.lt.s32.totalorder %s13, 1
      %s247 = scalar_select %p246, %s13, 1
      %s248 = scalar_lea.vmem %s2, %s247
      // Predicated region
      $region29: #{tpu_custom_call.1} parent=27 // pred_check
        %p249 = pneg %p83
      $region30: #{tpu_custom_call.1} parent=27 // pred_check_branch
        %251 = sbr.rel (%p249) target = $region32
      $region31: #{tpu_custom_call.1} parent=27 // pred_region
        _
      $region32: #{tpu_custom_call.1} parent=27 // pred_fallthru
        _
    $region28: #{tpu_custom_call.1} parent=5 // pred_fallthru
      _
    %p252 = scmp.le.s32.totalorder 2, %s8
    // Predicated region
    $region33: #{tpu_custom_call.1} parent=5 // pred_check
      %p253 = pneg %p252
    $region34: #{tpu_custom_call.1} parent=5 // pred_check_branch
      %255 = sbr.rel (%p253) target = $region36
    $region35: #{tpu_custom_call.1} parent=5 // pred_region
      %s256 = ssub.s32 %s8, 2
      // Predicated region
      $region37: #{tpu_custom_call.1} parent=35 // pred_check
        %p257 = pneg %p89
      $region38: #{tpu_custom_call.1} parent=35 // pred_check_branch
        %259 = sbr.rel (%p257) target = $region40
      $region39: #{tpu_custom_call.1} parent=35 // pred_region
        %p260 = scmp.lt.s32.totalorder %s14, 1
        %s261 = scalar_select %p260, %s14, 1
        %s262 = scalar_lea.vmem %s2, %s261
      $region40: #{tpu_custom_call.1} parent=35 // pred_fallthru
        _
    $region36: #{tpu_custom_call.1} parent=5 // pred_fallthru
      _
  $region6: #{tpu_custom_call.1} parent=0 // loop_footer
    %s12 = sadd.s32 1, %s8
  $region7: #{tpu_custom_call.1} parent=0 // loop_footer_branch
    %7 = sbr.rel target = $region3
  $region8: #{tpu_custom_call.1} parent=0 // loop_exit
    _

</llo_original>
